<compile_context>
chip_gen: v7x
topology: tpu7x:2x2x1
jax: 0.10.0
libtpu: 0.0.40
codegen_flags: <defaults>
</compile_context>

<pallas_src>
import jax
import jax.numpy as jnp
from jax.experimental import pallas as pl
from jax.experimental.pallas import tpu as pltpu


def _make_se_kernel(inv_l):
    """inv_l: compile-time 1/L constant (mean = f32 sum * inv_l)."""

    def kernel(x_ref, w1t_ref, w2t_ref, o_ref):
        x = x_ref[...]                                            # (TB, C, L) native dtype

        # Squeeze: per-channel mean over the lane axis, accumulated in f32.
        y = jnp.sum(x, axis=-1, dtype=jnp.float32) * inv_l        # (TB, C) f32

        # Excite: batched across the TB rows of this block (real MXU tiles).
        h = jnp.dot(y, w1t_ref[...].astype(jnp.float32),
                    preferred_element_type=jnp.float32)           # (TB, H)
        h = jnp.maximum(h, 0.0)
        s = jnp.dot(h, w2t_ref[...].astype(jnp.float32),
                    preferred_element_type=jnp.float32)           # (TB, C)
        s = jax.nn.sigmoid(s)

        # Scale: cast only the tiny gate; multiply/store the big tile in native dtype.
        o_ref[...] = x * s.astype(x.dtype)[:, :, None]

    return kernel


def _choose_tb(batch, row_bytes, max_block_bytes):
    """Largest divisor of `batch` whose (TB, C, L) block fits the byte budget."""
    tb = 1
    for d in range(1, batch + 1):
        if batch % d == 0 and d * row_bytes <= max_block_bytes:
            tb = d
    # Prefer >= 2 grid steps (v7x has 2 TensorCores) as long as the halved block
    # is still big enough (~512 KiB) to stay near the HBM roofline.
    if batch % 2 == 0 and batch // tb == 1 and tb >= 2:
        if (tb // 2) * row_bytes >= 512 * 1024:
            tb //= 2
    return tb


def se_block(x, w1, w2, *, max_block_bytes=2 * 1024 * 1024):
    """x: (B, C, L); w1: (H, C); w2: (C, H). Returns (B, C, L) matching PyTorch SEBlock."""
    B, C, L = x.shape
    H = w1.shape[0]
    assert w1.shape == (H, C) and w2.shape == (C, H)

    # Host-side transposes (free) so the in-kernel excite needs no XLU transpose.
    w1t = jnp.asarray(w1).T                                       # (C, H)
    w2t = jnp.asarray(w2).T                                       # (H, C)

    itemsize = jnp.dtype(x.dtype).itemsize
    row_bytes = C * L * itemsize
    tb = _choose_tb(B, row_bytes, max_block_bytes)
    grid_b = B // tb
    block_bytes = tb * row_bytes

    # in + out, double-buffered, plus resident weights and some slack.
    est_vmem = 4 * block_bytes + 2 * (w1t.size + w2t.size) * 4 + (1 << 20)
    vmem_limit = None
    if est_vmem > 32 * 1024 * 1024:
        # Raise the scoped limit only when needed; stay under v7x's 64 MiB physical.
        vmem_limit = min(est_vmem, 60 * 1024 * 1024)

    kernel = _make_se_kernel(1.0 / float(L))

    return pl.pallas_call(
        kernel,
        out_shape=jax.ShapeDtypeStruct((B, C, L), x.dtype),
        grid_spec=pltpu.PrefetchScalarGridSpec(
            num_scalar_prefetch=0,
            grid=(grid_b,),
            in_specs=[
                pl.BlockSpec((tb, C, L), lambda b: (b, 0, 0)),
                pl.BlockSpec((C, H), lambda b: (0, 0)),   # resident across steps
                pl.BlockSpec((H, C), lambda b: (0, 0)),   # resident across steps
            ],
            out_specs=pl.BlockSpec((tb, C, L), lambda b: (b, 0, 0)),
        ),
        compiler_params=pltpu.CompilerParams(
            dimension_semantics=("parallel",),
            vmem_limit_bytes=vmem_limit,
        ),
    )(x, w1t, w2t)


def se_block_ref(x, w1, w2):
    """Pure-JAX reference matching the PyTorch forward."""
    y = jnp.mean(x, axis=-1)                 # (B, C)
    h = jnp.maximum(y @ w1.T, 0.0)           # (B, H)
    s = jax.nn.sigmoid(h @ w2.T)             # (B, C)
    return x * s[..., None]


if __name__ == "__main__":
    # Small shapes consistent with the module: batch=2, channel=32, seq=64,
    # reduction=16 -> hidden = max(32 // 16, 1) = 2
    B, C, L = 2, 32, 64
    reduction = 16
    H = max(C // reduction, 1)

    key = jax.random.PRNGKey(0)
    kx, k1, k2 = jax.random.split(key, 3)
    x = jax.random.normal(kx, (B, C, L), dtype=jnp.float32)
    w1 = jax.random.normal(k1, (H, C), dtype=jnp.float32) * 0.1   # fc1: C -> H
    w2 = jax.random.normal(k2, (C, H), dtype=jnp.float32) * 0.1   # fc2: H -> C

    out = se_block(x, w1, w2)
    out = jax.block_until_ready(out)

    ref = se_block_ref(x, w1, w2)
    assert out.shape == (B, C, L)
    assert jnp.allclose(out, ref, atol=1e-5, rtol=1e-5), "mismatch vs reference"

    print("KERNEL_OK")
</pallas_src>

<mosaic_0001>
module attributes {stable_mosaic.version = 11 : i64} {
  func.func @kernel(%arg0: i32, %arg1: memref<2x32x64xf32, #tpu.memory_space<vmem>>, %arg2: memref<32x2xf32, #tpu.memory_space<vmem>>, %arg3: memref<2x32xf32, #tpu.memory_space<vmem>>, %arg4: memref<2x32x64xf32, #tpu.memory_space<vmem>>) attributes {dimension_semantics = [#tpu.dimension_semantics<parallel>], iteration_bounds = array<i64: 1>, scalar_prefetch = 0 : i64, scratch_operands = 0 : i64, tpu.core_type = #tpu.core_type<tc>, window_params = [{transform_indices = @transform_0, window_bounds = array<i64: 2, 32, 64>}, {pipeline_mode = #tpu.pipeline_mode<synchronous>, transform_indices = @transform_1, window_bounds = array<i64: 32, 2>}, {pipeline_mode = #tpu.pipeline_mode<synchronous>, transform_indices = @transform_2, window_bounds = array<i64: 2, 32>}, {transform_indices = @transform_3, window_bounds = array<i64: 2, 32, 64>}]} {
    %c0 = arith.constant 0 : index
    %c0_0 = arith.constant 0 : index
    %c0_1 = arith.constant 0 : index
    %0 = vector.load %arg1[%c0, %c0_0, %c0_1] : memref<2x32x64xf32, #tpu.memory_space<vmem>>, vector<2x32x64xf32>
    %cst = arith.constant dense<0.000000e+00> : vector<2x32xf32>
    %1 = vector.multi_reduction <add>, %0, %cst [2] : vector<2x32x64xf32> to vector<2x32xf32>
    %cst_2 = arith.constant 1.562500e-02 : f32
    %2 = vector.broadcast %cst_2 : f32 to vector<2x32xf32>
    %3 = arith.mulf %1, %2 : vector<2x32xf32>
    %c0_3 = arith.constant 0 : index
    %c0_4 = arith.constant 0 : index
    %4 = vector.load %arg2[%c0_3, %c0_4] : memref<32x2xf32, #tpu.memory_space<vmem>>, vector<32x2xf32>
    %cst_5 = arith.constant dense<0.000000e+00> : vector<2x2xf32>
    %5 = tpu.matmul %3, %4, %cst_5 {dimension_numbers = #tpu.dot_dimension_numbers<[1], [0], [0], [1], [0, 0, 1, 1], [], []>} : vector<2x32xf32>, vector<32x2xf32>, vector<2x2xf32> -> vector<2x2xf32>
    %cst_6 = arith.constant 0.000000e+00 : f32
    %6 = vector.broadcast %cst_6 : f32 to vector<2x2xf32>
    %7 = arith.maximumf %5, %6 : vector<2x2xf32>
    %c0_7 = arith.constant 0 : index
    %c0_8 = arith.constant 0 : index
    %8 = vector.load %arg3[%c0_7, %c0_8] : memref<2x32xf32, #tpu.memory_space<vmem>>, vector<2x32xf32>
    %cst_9 = arith.constant dense<0.000000e+00> : vector<2x32xf32>
    %9 = tpu.matmul %7, %8, %cst_9 {dimension_numbers = #tpu.dot_dimension_numbers<[1], [0], [0], [1], [0, 0, 1, 1], [], []>} : vector<2x2xf32>, vector<2x32xf32>, vector<2x32xf32> -> vector<2x32xf32>
    %10 = arith.negf %9 : vector<2x32xf32>
    %11 = math.exp %10 : vector<2x32xf32>
    %cst_10 = arith.constant 1.000000e+00 : f32
    %12 = vector.broadcast %cst_10 : f32 to vector<2x32xf32>
    %13 = arith.addf %12, %11 : vector<2x32xf32>
    %14 = arith.divf %12, %13 : vector<2x32xf32>
    %15 = vector.shape_cast %14 : vector<2x32xf32> to vector<2x32x1xf32>
    %16 = vector.broadcast %15 : vector<2x32x1xf32> to vector<2x32x64xf32>
    %17 = arith.mulf %0, %16 : vector<2x32x64xf32>
    %c0_11 = arith.constant 0 : index
    %c0_12 = arith.constant 0 : index
    %c0_13 = arith.constant 0 : index
    %18 = vector.load %arg4[%c0_11, %c0_12, %c0_13] : memref<2x32x64xf32, #tpu.memory_space<vmem>>, vector<2x32x64xf32>
    tpu.vector_store %arg4[%c0_11, %c0_12, %c0_13], %17 {strides = array<i32>} : memref<2x32x64xf32, #tpu.memory_space<vmem>>, vector<2x32x64xf32>,
    return
  }
  func.func @transform_0(%arg0: i32) -> (i32, i32, i32) {
    %c0_i32 = arith.constant 0 : i32
    %c0_i32_0 = arith.constant 0 : i32
    %c0_i32_1 = arith.constant 0 : i32
    return %arg0, %c0_i32, %c0_i32_0 : i32, i32, i32
  }
  func.func @transform_1(%arg0: i32) -> (i32, i32) {
    %c0_i32 = arith.constant 0 : i32
    %c0_i32_0 = arith.constant 0 : i32
    %c0_i32_1 = arith.constant 0 : i32
    return %c0_i32, %c0_i32_0 : i32, i32
  }
  func.func @transform_2(%arg0: i32) -> (i32, i32) {
    %c0_i32 = arith.constant 0 : i32
    %c0_i32_0 = arith.constant 0 : i32
    %c0_i32_1 = arith.constant 0 : i32
    return %c0_i32, %c0_i32_0 : i32, i32
  }
  func.func @transform_3(%arg0: i32) -> (i32, i32, i32) {
    %c0_i32 = arith.constant 0 : i32
    %c0_i32_0 = arith.constant 0 : i32
    %c0_i32_1 = arith.constant 0 : i32
    return %arg0, %c0_i32, %c0_i32_0 : i32, i32, i32
  }
}

</mosaic_0001>

<llo_original>
// kernel: tpu_custom_call.1
$region0: #{tpu_custom_call.1}
  #allocation0 [shape = 'u32[]', space=smem, size = 0x4, offset = 0x4, fixed_abs, tag = 'smem constant byte address 0x4 - core index']
  #allocation1 [shape = 'u32[144,128]{1,0:T(1,128)}', space=vmem, size = 0x12000, scoped, tag = 'internal scratch']
  %s0 = inlined_call_operand.hbm [shape: f32[2,32,64], index: 0, kind: input, shape index: {}]
  %s1 = inlined_call_operand.vmem [shape: f32[32,2], index: 1, kind: input, shape index: {}]
  %s2 = inlined_call_operand.vmem [shape: f32[2,32], index: 2, kind: input, shape index: {}]
  %s3 = inlined_call_operand.hbm [shape: f32[2,32,64], index: 3, kind: output, shape index: {}]
  %s4 = sld [smem:[#allocation0]]
  $region26: #{tpu_custom_call.1} parent=0
    _
  %s6 = ssub.s32 1, %s4
  %s7 = scalar_select 0, %s6, %s4
  $region1: #{tpu_custom_call.1} parent=0
    #allocation2 [shape = 'u8[32768]{0}', space=vmem, size = 0x8000, scoped, tag = 'input window, operand 0, single buffered']
    #allocation3 [shape = 's32[1]{0}', space=sflag, size = 0x4, scoped, tag = 'scoped memory for tpu_custom_call.1']
    #allocation4 [shape = 's32[1]{0}', space=sflag, size = 0x4, scoped, tag = 'scoped memory for tpu_custom_call.1']
    #allocation5 [shape = 'u8[32768]{0}', space=vmem, size = 0x8000, scoped, tag = 'output window, operand 0, single buffered']
    %8 = vsyncpa [#allocation3], 0
    %9 = vsyncpa [#allocation4], 0
    // Predicated region
    $region2: #{tpu_custom_call.1} parent=1 // pred_check
      _
    $region3: #{tpu_custom_call.1} parent=1 // pred_check_branch
      %11 = sbr.rel (0) target = $region5
    $region4: #{tpu_custom_call.1} parent=1 // pred_region
      %s13 = ssub.s32 1024, 1024
      %14 = vsyncadd [#allocation3], %s13
      %s15 = sshll.u32 [#allocation2], 4
      %s16 = int_to_ptr.vmem [resolvable:$true] %s15
      %21 = dma.hbm_to_vmem [thread:$0]  %s0, 1024, %s16, [#allocation3], 128, 128, 8
    $region5: #{tpu_custom_call.1} parent=1 // pred_fallthru
      _
    // Predicated region
    $region6: #{tpu_custom_call.1} parent=1 // pred_check
      _
    $region7: #{tpu_custom_call.1} parent=1 // pred_check_branch
      %23 = sbr.rel (0) target = $region9
    $region8: #{tpu_custom_call.1} parent=1 // pred_region
      _
    $region9: #{tpu_custom_call.1} parent=1 // pred_fallthru
      _
    // Predicated region
    $region10: #{tpu_custom_call.1} parent=1 // pred_check
      _
    $region11: #{tpu_custom_call.1} parent=1 // pred_check_branch
      %25 = sbr.rel (0) target = $region13
    $region12: #{tpu_custom_call.1} parent=1 // pred_region
      _
    $region13: #{tpu_custom_call.1} parent=1 // pred_fallthru
      _
    // Predicated region
    $region14: #{tpu_custom_call.1} parent=1 // pred_check
      _
    $region15: #{tpu_custom_call.1} parent=1 // pred_check_branch
      %27 = sbr.rel (0) target = $region17
    $region16: #{tpu_custom_call.1} parent=1 // pred_region
      %28 = dma.done [#allocation3], 1024
    $region17: #{tpu_custom_call.1} parent=1 // pred_fallthru
      _
    %v29 = vld [vmem:[#allocation2] sm:$0xff]
    %v30 = vld [vmem:[#allocation2 + $0x8] sm:$0xff]
    %v31 = vld [vmem:[#allocation2 + $0x10] sm:$0xff]
    %v32 = vld [vmem:[#allocation2 + $0x18] sm:$0xff]
    %v33 = vld [vmem:[#allocation2 + $0x20] sm:$0xff]
    %v34 = vld [vmem:[#allocation2 + $0x28] sm:$0xff]
    %v35 = vld [vmem:[#allocation2 + $0x30] sm:$0xff]
    %v36 = vld [vmem:[#allocation2 + $0x38] sm:$0xff]
    %vm37 = vcmask 523264
    %v38 = vsel %vm37, %v29, 0.0
    %39 = vadd.xlane.f32.xlu0 %v38
    %v40 = vpop.xlane.xlu0 %39
    %v41 = vsel %vm37, %v30, 0.0
    %42 = vadd.xlane.f32.xlu0 %v41
    %v43 = vpop.xlane.xlu0 %42
    %v44 = vsel %vm37, %v31, 0.0
    %45 = vadd.xlane.f32.xlu0 %v44
    %v46 = vpop.xlane.xlu0 %45
    %v47 = vsel %vm37, %v32, 0.0
    %48 = vadd.xlane.f32.xlu0 %v47
    %v49 = vpop.xlane.xlu0 %48
    %v50 = vsel %vm37, %v33, 0.0
    %51 = vadd.xlane.f32.xlu0 %v50
    %v52 = vpop.xlane.xlu0 %51
    %v53 = vsel %vm37, %v34, 0.0
    %54 = vadd.xlane.f32.xlu0 %v53
    %v55 = vpop.xlane.xlu0 %54
    %v56 = vsel %vm37, %v35, 0.0
    %57 = vadd.xlane.f32.xlu0 %v56
    %v58 = vpop.xlane.xlu0 %57
    %v59 = vsel %vm37, %v36, 0.0
    %60 = vadd.xlane.f32.xlu0 %v59
    %v61 = vpop.xlane.xlu0 %60
    %v62 = vmul.f32 %v40, 0.015625
    %v63 = vmul.f32 %v43, 0.015625
    %v64 = vmul.f32 %v46, 0.015625
    %v65 = vmul.f32 %v49, 0.015625
    %v66 = vmul.f32 %v52, 0.015625
    %v67 = vmul.f32 %v55, 0.015625
    %v68 = vmul.f32 %v58, 0.015625
    %v69 = vmul.f32 %v61, 0.015625
    %v70 = vld [vmem:[%s1] sm:$0xff]
    %v71 = vld [vmem:[%s1 + $0x8] sm:$0xff]
    %v72 = vld [vmem:[%s1 + $0x10] sm:$0xff]
    %v73 = vld [vmem:[%s1 + $0x18] sm:$0xff]
    %v82 = vlaneseq
    %v83 = vand.u32 %v82, 127
    %v84 = vlaneseq
    %v85 = vshrl.u32 %v84, 7
    %v86 = vsub.s32 %v83, %v85
    %v87 = vrot.slane %v62, %v86
    %v88 = vadd.s32 %v83, 4294967288
    %v89 = vlaneseq
    %v90 = vshrl.u32 %v89, 7
    %v91 = vsub.s32 %v88, %v90
    %v92 = vrot.slane %v63, %v91
    %vm93 = vcmask 130112
    %v94 = vsel %vm93, %v92, %v87
    %v95 = vadd.s32 %v83, 4294967280
    %v96 = vlaneseq
    %v97 = vshrl.u32 %v96, 7
    %v98 = vsub.s32 %v95, %v97
    %v99 = vrot.slane %v64, %v98
    %vm100 = vcmask 195712
    %v101 = vsel %vm100, %v99, %v94
    %v102 = vadd.s32 %v83, 4294967272
    %v103 = vlaneseq
    %v104 = vshrl.u32 %v103, 7
    %v105 = vsub.s32 %v102, %v104
    %v106 = vrot.slane %v65, %v105
    %vm107 = vcmask 261312
    %v108 = vsel %vm107, %v106, %v101
    %v109 = vlaneseq
    %v110 = vshrl.u32 %v109, 7
    %v111 = vsub.s32 %v83, %v110
    %v112 = vrot.slane %v66, %v111
    %v113 = vlaneseq
    %v114 = vshrl.u32 %v113, 7
    %v115 = vsub.s32 %v88, %v114
    %v116 = vrot.slane %v67, %v115
    %v117 = vsel %vm93, %v116, %v112
    %v118 = vlaneseq
    %v119 = vshrl.u32 %v118, 7
    %v120 = vsub.s32 %v95, %v119
    %v121 = vrot.slane %v68, %v120
    %v122 = vsel %vm100, %v121, %v117
    %v123 = vlaneseq
    %v124 = vshrl.u32 %v123, 7
    %v125 = vsub.s32 %v102, %v124
    %v126 = vrot.slane %v69, %v125
    %v127 = vsel %vm107, %v126, %v122
    %vm128 = vcmask 1041409
    %v129 = vsel %vm128, %v127, %v108
    %vm130 = vcmask 261120
    %v131 = vsel %vm130, %v129, 0
    %133 = vmatprep.subr.mxu0 0.0
    %134 = vmatpush1.msra.mxu0 %v70
    %135 = vmatprep.subr.mxu0 0.0
    %136 = vmatpush1.msra.mxu0 %v71
    %137 = vmatprep.subr.mxu0 0.0
    %138 = vmatpush1.msra.mxu0 %v72
    %139 = vmatprep.subr.mxu0 0.0
    %140 = vmatpush1.msra.mxu0 %v73
    %141 = vmatprep.subr.mxu0 0.0
    %142 = vmatpush1.msra.mxu0 0.0
    %143 = vmatprep.subr.mxu0 0.0
    %144 = vmatpush1.msra.mxu0 0.0
    %145 = vmatprep.subr.mxu0 0.0
    %146 = vmatpush1.msra.mxu0 0.0
    %147 = vmatprep.subr.mxu0 0.0
    %148 = vmatpush1.msra.mxu0 0.0
    %149 = vmatprep.subr.mxu0 0.0
    %150 = vmatpush1.msra.mxu0 0.0
    %151 = vmatprep.subr.mxu0 0.0
    %152 = vmatpush1.msra.mxu0 0.0
    %153 = vmatprep.subr.mxu0 0.0
    %154 = vmatpush1.msra.mxu0 0.0
    %155 = vmatprep.subr.mxu0 0.0
    %156 = vmatpush1.msra.mxu0 0.0
    %157 = vmatprep.subr.mxu0 0.0
    %158 = vmatpush1.msra.mxu0 0.0
    %159 = vmatprep.subr.mxu0 0.0
    %160 = vmatpush1.msra.mxu0 0.0
    %161 = vmatprep.subr.mxu0 0.0
    %162 = vmatpush1.msra.mxu0 0.0
    %163 = vmatprep.subr.mxu0 0.0
    %164 = vmatpush1.msra.mxu0 0.0
    %165 = vmatprep.subr.mxu0 0.0
    %166 = vmatpush1.msra.mxu0 0.0
    %167 = vmatprep.subr.mxu0 0.0
    %168 = vmatpush1.msra.mxu0 0.0
    %169 = vmatprep.subr.mxu0 0.0
    %170 = vmatpush1.msra.mxu0 0.0
    %171 = vmatprep.subr.mxu0 0.0
    %172 = vmatpush1.msra.mxu0 0.0
    %173 = vmatprep.subr.mxu0 0.0
    %174 = vmatpush1.msra.mxu0 0.0
    %175 = vmatprep.subr.mxu0 0.0
    %176 = vmatpush1.msra.mxu0 0.0
    %177 = vmatprep.subr.mxu0 0.0
    %178 = vmatpush1.msra.mxu0 0.0
    %179 = vmatprep.subr.mxu0 0.0
    %180 = vmatpush1.msra.mxu0 0.0
    %181 = vmatprep.subr.mxu0 0.0
    %182 = vmatpush1.msra.mxu0 0.0
    %183 = vmatprep.subr.mxu0 0.0
    %184 = vmatpush1.msra.mxu0 0.0
    %185 = vmatprep.subr.mxu0 0.0
    %186 = vmatpush1.msra.mxu0 0.0
    %187 = vmatprep.subr.mxu0 0.0
    %188 = vmatpush1.msra.mxu0 0.0
    %189 = vmatprep.subr.mxu0 0.0
    %190 = vmatpush1.msra.mxu0 0.0
    %191 = vmatprep.subr.mxu0 0.0
    %192 = vmatpush1.msra.mxu0 0.0
    %193 = vmatprep.subr.mxu0 0.0
    %194 = vmatpush1.msra.mxu0 0.0
    %195 = vmatprep.subr.mxu0 0.0
    %196 = vmatpush1.msra.mxu0 0.0
    %197 = vmatprep.mubr.f32.mxu0 0.0
    %198 = vmatmul.mubr.f32.gmra.mrb[0].mxu0 %v131
    %v199 = vpop.f32.mrb[0].mxu0
    %v200 = vadd.f32 0.0, %v199
    %v201 = vpop.f32.mrb[0].mxu0
    %202 = vdwg.mxu0
    %v203 = vmax.f32 %v200, 0.0
    %v204 = vld [vmem:[%s2] sm:$0x3]
    %vm205 = vcmask 15360
    %v207 = vsel %vm205, %v203, 0
    %vm209 = vcmask 1041408
    %v211 = vsel %vm209, %v204, 0
    %213 = vmatprep.subr.mxu0 0.0
    %214 = vmatpush1.msra.mxu0 %v211
    %215 = vmatprep.subr.mxu0 0.0
    %216 = vmatpush1.msra.mxu0 0.0
    %217 = vmatprep.subr.mxu0 0.0
    %218 = vmatpush1.msra.mxu0 0.0
    %219 = vmatprep.subr.mxu0 0.0
    %220 = vmatpush1.msra.mxu0 0.0
    %221 = vmatprep.subr.mxu0 0.0
    %222 = vmatpush1.msra.mxu0 0.0
    %223 = vmatprep.subr.mxu0 0.0
    %224 = vmatpush1.msra.mxu0 0.0
    %225 = vmatprep.subr.mxu0 0.0
    %226 = vmatpush1.msra.mxu0 0.0
    %227 = vmatprep.subr.mxu0 0.0
    %228 = vmatpush1.msra.mxu0 0.0
    %229 = vmatprep.subr.mxu0 0.0
    %230 = vmatpush1.msra.mxu0 0.0
    %231 = vmatprep.subr.mxu0 0.0
    %232 = vmatpush1.msra.mxu0 0.0
    %233 = vmatprep.subr.mxu0 0.0
    %234 = vmatpush1.msra.mxu0 0.0
    %235 = vmatprep.subr.mxu0 0.0
    %236 = vmatpush1.msra.mxu0 0.0
    %237 = vmatprep.subr.mxu0 0.0
    %238 = vmatpush1.msra.mxu0 0.0
    %239 = vmatprep.subr.mxu0 0.0
    %240 = vmatpush1.msra.mxu0 0.0
    %241 = vmatprep.subr.mxu0 0.0
    %242 = vmatpush1.msra.mxu0 0.0
    %243 = vmatprep.subr.mxu0 0.0
    %244 = vmatpush1.msra.mxu0 0.0
    %245 = vmatprep.subr.mxu0 0.0
    %246 = vmatpush1.msra.mxu0 0.0
    %247 = vmatprep.subr.mxu0 0.0
    %248 = vmatpush1.msra.mxu0 0.0
    %249 = vmatprep.subr.mxu0 0.0
    %250 = vmatpush1.msra.mxu0 0.0
    %251 = vmatprep.subr.mxu0 0.0
    %252 = vmatpush1.msra.mxu0 0.0
    %253 = vmatprep.subr.mxu0 0.0
    %254 = vmatpush1.msra.mxu0 0.0
    %255 = vmatprep.subr.mxu0 0.0
    %256 = vmatpush1.msra.mxu0 0.0
    %257 = vmatprep.subr.mxu0 0.0
    %258 = vmatpush1.msra.mxu0 0.0
    %259 = vmatprep.subr.mxu0 0.0
    %260 = vmatpush1.msra.mxu0 0.0
    %261 = vmatprep.subr.mxu0 0.0
    %262 = vmatpush1.msra.mxu0 0.0
    %263 = vmatprep.subr.mxu0 0.0
    %264 = vmatpush1.msra.mxu0 0.0
    %265 = vmatprep.subr.mxu0 0.0
    %266 = vmatpush1.msra.mxu0 0.0
    %267 = vmatprep.subr.mxu0 0.0
    %268 = vmatpush1.msra.mxu0 0.0
    %269 = vmatprep.subr.mxu0 0.0
    %270 = vmatpush1.msra.mxu0 0.0
    %271 = vmatprep.subr.mxu0 0.0
    %272 = vmatpush1.msra.mxu0 0.0
    %273 = vmatprep.subr.mxu0 0.0
    %274 = vmatpush1.msra.mxu0 0.0
    %275 = vmatprep.subr.mxu0 0.0
    %276 = vmatpush1.msra.mxu0 0.0
    %277 = vmatprep.mubr.f32.mxu0 0.0
    %278 = vmatmul.mubr.f32.gmra.mrb[0].mxu0 %v207
    %v279 = vpop.f32.mrb[0].mxu0
    %v280 = vadd.f32 0.0, %v279
    %v281 = vpop.f32.mrb[0].mxu0
    %282 = vdwg.mxu0
    %v283 = vxor.u32 %v280, 2147483648
    %v284 = vmul.f32 %v283, 1.442695
    %v285 = vpow.pop %v284
    %v286 = vadd.f32 %v285, 1.0
    %v287 = vrcp.pop %v286
    %v288 = vmul.f32 1.0, %v287
    %v289 = vlaneseq
    %v290 = vshrl.u32 %v289, 7
    %v291 = vsub.s32 0, %v290
    %v292 = vrot.slane %v288, %v291
    %294 = vbcast.lane.b32.xlu0 %v292, 256
    %v295 = vpop.permute.xlu0 %294
    %s297 = sor.u32 256, 8
    %298 = vbcast.lane.b32.xlu0 %v292, %s297
    %v299 = vpop.permute.xlu0 %298
    %s301 = sor.u32 256, 16
    %302 = vbcast.lane.b32.xlu0 %v292, %s301
    %v303 = vpop.permute.xlu0 %302
    %s305 = sor.u32 256, 24
    %306 = vbcast.lane.b32.xlu0 %v292, %s305
    %v307 = vpop.permute.xlu0 %306
    %v308 = vlaneseq
    %v309 = vshrl.u32 %v308, 7
    %v310 = vsub.s32 1, %v309
    %v311 = vrot.slane %v288, %v310
    %313 = vbcast.lane.b32.xlu0 %v311, 256
    %v314 = vpop.permute.xlu0 %313
    %s316 = sor.u32 256, 8
    %317 = vbcast.lane.b32.xlu0 %v311, %s316
    %v318 = vpop.permute.xlu0 %317
    %s320 = sor.u32 256, 16
    %321 = vbcast.lane.b32.xlu0 %v311, %s320
    %v322 = vpop.permute.xlu0 %321
    %s324 = sor.u32 256, 24
    %325 = vbcast.lane.b32.xlu0 %v311, %s324
    %v326 = vpop.permute.xlu0 %325
    %v327 = vmul.f32 %v29, %v295
    %v328 = vmul.f32 %v30, %v299
    %v329 = vmul.f32 %v31, %v303
    %v330 = vmul.f32 %v32, %v307
    %v331 = vmul.f32 %v33, %v314
    %v332 = vmul.f32 %v34, %v318
    %v333 = vmul.f32 %v35, %v322
    %v334 = vmul.f32 %v36, %v326
    %335 = vst.msk [vmem:[#allocation5] sm:$0xff] %vm37, %v327
    %336 = vst.msk [vmem:[#allocation5 + $0x8] sm:$0xff] %vm37, %v328
    %337 = vst.msk [vmem:[#allocation5 + $0x10] sm:$0xff] %vm37, %v329
    %338 = vst.msk [vmem:[#allocation5 + $0x18] sm:$0xff] %vm37, %v330
    %339 = vst.msk [vmem:[#allocation5 + $0x20] sm:$0xff] %vm37, %v331
    %340 = vst.msk [vmem:[#allocation5 + $0x28] sm:$0xff] %vm37, %v332
    %341 = vst.msk [vmem:[#allocation5 + $0x30] sm:$0xff] %vm37, %v333
    %342 = vst.msk [vmem:[#allocation5 + $0x38] sm:$0xff] %vm37, %v334
    // Predicated region
    $region18: #{tpu_custom_call.1} parent=1 // pred_check
      _
    $region19: #{tpu_custom_call.1} parent=1 // pred_check_branch
      %344 = sbr.rel (0) target = $region21
    $region20: #{tpu_custom_call.1} parent=1 // pred_region
      %s346 = ssub.s32 1024, 1024
      %347 = vsyncadd [#allocation4], %s346
      %s348 = sshll.u32 [#allocation5], 4
      %s349 = int_to_ptr.vmem [resolvable:$true] %s348
      %354 = dma.vmem_to_hbm [thread:$0]  %s349, 1024, %s3, [#allocation4], 128, 128, 8
    $region21: #{tpu_custom_call.1} parent=1 // pred_fallthru
      _
    // Predicated region
    $region22: #{tpu_custom_call.1} parent=1 // pred_check
      _
    $region23: #{tpu_custom_call.1} parent=1 // pred_check_branch
      %356 = sbr.rel (0) target = $region25
    $region24: #{tpu_custom_call.1} parent=1 // pred_region
      %357 = dma.done [#allocation4], 1024
    $region25: #{tpu_custom_call.1} parent=1 // pred_fallthru
      _
    %358 = vsyncpa [#allocation3], 1
    %359 = vsyncpa [#allocation4], 1

</llo_original>
